<compile_context>
chip_gen: v7x
topology: tpu7x:2x2x1
jax: 0.10.0
libtpu: 0.0.40
codegen_flags: <defaults>
</compile_context>

<pallas_src>
import functools

import jax
import jax.numpy as jnp
from jax.experimental import pallas as pl
from jax.experimental.pallas import tpu as pltpu

EPS = 1e-5  # torch.nn.InstanceNorm2d default


def _round_up(x, m):
    return (x + m - 1) // m * m


def _cdiv(a, b):
    return -(-a // b)


def _conv_in_relu_kernel(xb_ref, xh_ref, w_ref, m_ref, o_ref,
                         conv_buf, ssum_ref, ssq_ref, *,
                         c_in, ksize, wp2, s_t, n_s, hw_true):
    """One grid step = (batch n, C_out tile co, spatial tile s).

    xb_ref : (1, 4*c_in, s_t)    bf16 space-to-depth input, body of the window
    xh_ref : (1, 4*c_in, halo)   bf16 halo that follows the body
    w_ref  : (tile_co, K*K*c_in) bf16 conv weight, (kh, kw, ci) minor order
    m_ref  : (1, s_t)            f32 validity mask (0 on junk / padding lanes)
    o_ref  : (1, tile_co, E_pad) output block, resident across the s sweep
    conv_buf : (n_s, tile_co, s_t) bf16 un-normalized conv (resident scratch)
    ssum_ref / ssq_ref : (tile_co, 128) f32 lane-wise partial sum / sum-of-sq
    """
    s = pl.program_id(2)

    @pl.when(s == 0)
    def _init():
        ssum_ref[...] = jnp.zeros_like(ssum_ref)
        ssq_ref[...] = jnp.zeros_like(ssq_ref)

    # ---- fused im2col: gather the K*K taps with STATIC slices of the window.
    win = jnp.concatenate([xb_ref[0], xh_ref[0]], axis=-1)   # (4*c_in, s_t+halo)
    taps = []
    for kh in range(ksize):
        for kw in range(ksize):
            phase = (kh % 2) * 2 + (kw % 2)
            off = (kh // 2) * wp2 + (kw // 2)                # static lane offset
            taps.append(win[phase * c_in:(phase + 1) * c_in, off:off + s_t])
    patches = jnp.concatenate(taps, axis=0)                  # (K*K*c_in, s_t)

    # ---- conv tile on the MXU: bf16 x bf16 -> f32 accumulation.
    conv = jnp.dot(w_ref[...], patches,
                   preferred_element_type=jnp.float32)       # (tile_co, s_t)

    # ---- streaming InstanceNorm statistics (lane-wise partials, VPU only).
    cm = conv * m_ref[...]                                   # junk lanes -> 0
    psum = cm[:, 0:128]
    psq = psum * psum
    for j in range(1, s_t // 128):
        blk = cm[:, j * 128:(j + 1) * 128]
        psum = psum + blk
        psq = psq + blk * blk
    ssum_ref[...] += psum
    ssq_ref[...] += psq

    # Stash the un-normalized conv tile (bf16 resident; stats already in f32).
    conv_buf[s] = conv.astype(conv_buf.dtype)

    # ---- finalize: per-channel normalize + ReLU once the spatial sweep ends.
    @pl.when(s == n_s - 1)
    def _finalize():
        inv_hw = 1.0 / float(hw_true)
        mean = jnp.sum(ssum_ref[...], axis=-1, keepdims=True) * inv_hw
        var = jnp.sum(ssq_ref[...], axis=-1, keepdims=True) * inv_hw - mean * mean
        scale = jax.lax.rsqrt(jnp.maximum(var, 0.0) + EPS)   # (tile_co, 1)
        # Chunked normalize: bounds the f32 temporary to one (tile_co, s_t)
        # tile and keeps every store lane-dense at a static 128-aligned offset.
        for c in range(n_s):
            y = (conv_buf[c].astype(jnp.float32) - mean) * scale
            y = jnp.maximum(y, 0.0)
            o_ref[0, :, c * s_t:(c + 1) * s_t] = y.astype(o_ref.dtype)


def convolution_block(x, weight, bias=None, *, kernel_size=4, stride=2, padding=1,
                      out_dtype=jnp.bfloat16, spatial_tile_target=None):
    """Conv2d(k, s=2, p) -> InstanceNorm2d(affine=False) -> ReLU.  NCHW in/out.

    `bias` is accepted for API parity but not applied: the no-affine
    InstanceNorm subtracts the per-channel spatial mean, which cancels any
    per-channel constant exactly.
    """
    del bias  # mathematically a no-op under no-affine InstanceNorm
    # TODO(synk): the in_res=False / activation=False constructor variants are
    # not implemented; this covers the module's default forward (conv+IN+ReLU).
    assert stride == 2, "kernel implements the module's stride-2 downsampling conv"
    N, C_in, H, W = x.shape
    C_out = weight.shape[0]
    K = kernel_size
    assert weight.shape == (C_out, C_in, K, K)
    assert H + 2 * padding >= K and W + 2 * padding >= K

    H_out = (H + 2 * padding - K) // 2 + 1
    W_out = (W + 2 * padding - K) // 2 + 1
    Hp = _round_up(H + 2 * padding, 2)
    Wp = _round_up(W + 2 * padding, 2)
    Hp2, Wp2 = Hp // 2, Wp // 2
    CK = C_in * K * K

    # ---- cheap input prep (one input-sized pass): pad + stride-2 space-to-
    # depth + flatten, cast to bf16.  No K*K im2col blow-up is written to HBM.
    xp = jnp.pad(x.astype(jnp.bfloat16),
                 ((0, 0), (0, 0),
                  (padding, Hp - H - padding), (padding, Wp - W - padding)))
    x4 = xp.reshape(N, C_in, Hp2, 2, Wp2, 2)
    x4 = x4.transpose(0, 3, 5, 1, 2, 4).reshape(N, 4 * C_in, Hp2 * Wp2)

    # Extended flat spatial: Wp2 lanes per output row (last one junk), so every
    # conv tap is a contiguous, statically-offset slice of the same buffer.
    E = H_out * Wp2
    d_max = (K - 1) // 2
    halo = _round_up(d_max * Wp2 + d_max + 1, 128)

    if spatial_tile_target is None:
        # ~2 MiB of bf16 patches per step, clamped into the 256..2048 range.
        spatial_tile_target = min(2048, max(256, (2 * 2 ** 20) // (2 * CK)))
    n_s = max(1, _cdiv(E, spatial_tile_target))
    s_t = _round_up(_cdiv(E, n_s), halo)       # multiple of halo (and of 128)
    n_s = _cdiv(E, s_t)
    E_pad = n_s * s_t

    SP = _round_up(max(E_pad + halo, Hp2 * Wp2 + 1), 128)
    x4f = jnp.pad(x4, ((0, 0), (0, 0), (0, SP - Hp2 * Wp2)))

    # Weight: (C_out, C_in, K, K) -> (C_out_pad, K*K*C_in), (kh, kw, ci) minor.
    w2d = jnp.transpose(weight, (0, 2, 3, 1)).reshape(C_out, CK).astype(jnp.bfloat16)

    # Mask of valid extended-spatial lanes (drops the junk column + tail pad).
    idx = jnp.arange(E_pad, dtype=jnp.int32)
    mask = ((idx < E) & (idx % Wp2 != Wp2 - 1)).astype(jnp.float32).reshape(1, E_pad)

    # ---- per-device VMEM budgeting: tile C_out so the resident blocks fit.
    try:
        vmem_cap = int(pltpu.get_tpu_info().vmem_capacity_bytes)
    except Exception:                      # conservative fallback (v7x-sized)
        vmem_cap = 64 * 2 ** 20
    budget = int(vmem_cap * 0.85)
    out_isz = jnp.dtype(out_dtype).itemsize
    cb = _round_up(4 * C_in, 8)

    def vmem_need(tile_co):
        b = 2 * cb * s_t * 2                        # body blocks (bf16, x2 bufs)
        b += 2 * cb * halo * 2                      # halo blocks
        b += 2 * tile_co * _round_up(CK, 128) * 2   # weight blocks
        b += 2 * 8 * s_t * 4                        # mask blocks
        b += 2 * tile_co * E_pad * out_isz          # resident output block
        b += n_s * tile_co * s_t * 2                # bf16 conv scratch
        b += 2 * tile_co * 128 * 4                  # stats scratch
        # live per-step intermediates (window, taps+patches, conv/mask/norm temps)
        b += cb * (s_t + halo) * 2 + 2 * _round_up(CK, 8) * s_t * 2 + 3 * tile_co * s_t * 4
        return int(b * 1.15) + (2 << 20)

    tile_co = _round_up(C_out, 8)
    if N == 1 and tile_co > 8:
        # keep both TensorCores busy (v7x megacore) when there is no batch axis
        tile_co = _round_up(_cdiv(tile_co, 2), 8)
    while tile_co > 8 and vmem_need(tile_co) > budget:
        tile_co = max(8, _round_up(tile_co // 2, 8))
    # TODO(synk): if even tile_co=8 exceeds the budget (gigantic feature maps),
    # fall back to a two-pass conv+stats / normalize scheme.
    C_out_pad = _cdiv(_round_up(C_out, 8), tile_co) * tile_co
    n_co = C_out_pad // tile_co
    if C_out_pad > C_out:
        w2d = jnp.pad(w2d, ((0, C_out_pad - C_out), (0, 0)))

    vmem_limit = min(budget, max(2 * vmem_need(tile_co), 32 * 2 ** 20))

    kernel = functools.partial(
        _conv_in_relu_kernel,
        c_in=C_in, ksize=K, wp2=Wp2, s_t=s_t, n_s=n_s, hw_true=H_out * W_out)

    hb = s_t // halo  # halo blocks per body block (halo | s_t by construction)

    out_ext = pl.pallas_call(
        kernel,
        out_shape=jax.ShapeDtypeStruct((N, C_out_pad, E_pad), out_dtype),
        grid_spec=pltpu.PrefetchScalarGridSpec(
            num_scalar_prefetch=0,
            grid=(N, n_co, n_s),
            in_specs=[
                # body + halo windows of the space-to-depth input (the overlap
                # is expressed as two block streams over the same HBM array).
                pl.BlockSpec((1, 4 * C_in, s_t), lambda n, co, s: (n, 0, s)),
                pl.BlockSpec((1, 4 * C_in, halo),
                             lambda n, co, s: (n, 0, (s + 1) * hb)),
                pl.BlockSpec((tile_co, CK), lambda n, co, s: (co, 0)),
                pl.BlockSpec((1, s_t), lambda n, co, s: (0, s)),
            ],
            out_specs=pl.BlockSpec((1, tile_co, E_pad), lambda n, co, s: (n, co, 0)),
            scratch_shapes=[
                pltpu.VMEM((n_s, tile_co, s_t), jnp.bfloat16),
                pltpu.VMEM((tile_co, 128), jnp.float32),
                pltpu.VMEM((tile_co, 128), jnp.float32),
            ],
        ),
        compiler_params=pltpu.CompilerParams(
            dimension_semantics=("parallel", "parallel", "arbitrary"),
            vmem_limit_bytes=vmem_limit),
    )(x4f, x4f, w2d, mask)

    # Drop padded channels / lanes and the per-row junk column (pure slicing).
    out = out_ext[:, :C_out, :E].reshape(N, C_out, H_out, Wp2)[..., :W_out]
    return out


def _reference(x, weight, bias, *, stride=2, padding=1):
    """Plain-JAX f32 reference: conv (+bias) -> instance norm -> relu."""
    y = jax.lax.conv_general_dilated(
        x.astype(jnp.float32), weight.astype(jnp.float32),
        window_strides=(stride, stride),
        padding=((padding, padding), (padding, padding)),
        dimension_numbers=("NCHW", "OIHW", "NCHW"),
        precision=jax.lax.Precision.HIGHEST)
    y = y + bias.reshape(1, -1, 1, 1)
    mean = jnp.mean(y, axis=(2, 3), keepdims=True)
    var = jnp.mean((y - mean) ** 2, axis=(2, 3), keepdims=True)
    y = (y - mean) / jnp.sqrt(var + EPS)
    return jnp.maximum(y, 0.0)


if __name__ == "__main__":
    root = jax.random.PRNGKey(0)

    def run_case(tag, case_key, N, C_in, H, W, C_out, **kwargs):
        kx, kw, kb = jax.random.split(case_key, 3)
        x = jax.random.normal(kx, (N, C_in, H, W), dtype=jnp.float32)
        fan_in = C_in * 4 * 4
        bound = 1.0 / (fan_in ** 0.5)
        weight = jax.random.uniform(kw, (C_out, C_in, 4, 4), jnp.float32, -bound, bound)
        bias = jax.random.uniform(kb, (C_out,), jnp.float32, -bound, bound)

        out = convolution_block(x, weight, bias, kernel_size=4, stride=2,
                                padding=1, **kwargs)
        out = jax.block_until_ready(out)
        ref = _reference(x, weight, bias, stride=2, padding=1)
        assert out.shape == ref.shape, (tag, out.shape, ref.shape)
        err = float(jnp.max(jnp.abs(out.astype(jnp.float32) - ref)))
        # bf16 MXU operands + bf16 resident/output vs an all-f32 reference.
        assert err < 7.5e-2, (tag, err)

    # Small default-shape case (single spatial tile, single C_out tile).
    run_case("case0", jax.random.fold_in(root, 0), 2, 4, 16, 16, 8)
    # Multi spatial tile + split C_out (batch-1 megacore path).
    run_case("case1", jax.random.fold_in(root, 1), 1, 8, 32, 32, 16,
             spatial_tile_target=256)

    print("KERNEL_OK")
</pallas_src>

<mosaic_0001>
module attributes {stable_mosaic.version = 11 : i64} {
  func.func @_conv_in_relu_kernel(%arg0: i32, %arg1: i32, %arg2: i32, %arg3: memref<1x16x128xbf16, #tpu.memory_space<vmem>>, %arg4: memref<1x16x128xbf16, #tpu.memory_space<vmem>>, %arg5: memref<8x64xbf16, #tpu.memory_space<vmem>>, %arg6: memref<1x128xf32, #tpu.memory_space<vmem>>, %arg7: memref<1x8x128xbf16, #tpu.memory_space<vmem>>, %arg8: memref<1x8x128xbf16, #tpu.memory_space<vmem>>, %arg9: memref<8x128xf32, #tpu.memory_space<vmem>>, %arg10: memref<8x128xf32, #tpu.memory_space<vmem>>) attributes {dimension_semantics = [#tpu.dimension_semantics<parallel>, #tpu.dimension_semantics<parallel>, #tpu.dimension_semantics<arbitrary>], iteration_bounds = array<i64: 2, 1, 1>, scalar_prefetch = 0 : i64, scratch_operands = 3 : i64, tpu.core_type = #tpu.core_type<tc>, window_params = [{transform_indices = @transform_0, window_bounds = array<i64: 1, 16, 128>}, {transform_indices = @transform_1, window_bounds = array<i64: 1, 16, 128>}, {transform_indices = @transform_2, window_bounds = array<i64: 8, 64>}, {transform_indices = @transform_3, window_bounds = array<i64: 1, 128>}, {transform_indices = @transform_4, window_bounds = array<i64: 1, 8, 128>}]} {
    %c0_i32 = arith.constant 0 : i32
    %0 = arith.cmpi eq, %arg2, %c0_i32 : i32
    %1 = arith.extui %0 : i1 to i32
    %c0_i32_0 = arith.constant 0 : i32
    %2 = arith.cmpi ne, %1, %c0_i32_0 : i32
    scf.if %2 {
      %cst_22 = arith.constant 0.000000e+00 : f32
      %45 = vector.broadcast %cst_22 : f32 to vector<8x128xf32>
      %c0_23 = arith.constant 0 : index
      %c0_24 = arith.constant 0 : index
      %46 = vector.load %arg9[%c0_23, %c0_24] : memref<8x128xf32, #tpu.memory_space<vmem>>, vector<8x128xf32>
      tpu.vector_store %arg9[%c0_23, %c0_24], %45 {strides = array<i32>} : memref<8x128xf32, #tpu.memory_space<vmem>>, vector<8x128xf32>,
      %cst_25 = arith.constant 0.000000e+00 : f32
      %47 = vector.broadcast %cst_25 : f32 to vector<8x128xf32>
      %c0_26 = arith.constant 0 : index
      %c0_27 = arith.constant 0 : index
      %48 = vector.load %arg10[%c0_26, %c0_27] : memref<8x128xf32, #tpu.memory_space<vmem>>, vector<8x128xf32>
      tpu.vector_store %arg10[%c0_26, %c0_27], %47 {strides = array<i32>} : memref<8x128xf32, #tpu.memory_space<vmem>>, vector<8x128xf32>,
    } else {
    }
    %c0 = arith.constant 0 : index
    %c0_1 = arith.constant 0 : index
    %c0_2 = arith.constant 0 : index
    %3 = vector.load %arg3[%c0, %c0_1, %c0_2] : memref<1x16x128xbf16, #tpu.memory_space<vmem>>, vector<1x16x128xbf16>
    %4 = vector.shape_cast %3 : vector<1x16x128xbf16> to vector<16x128xbf16>
    %c0_3 = arith.constant 0 : index
    %c0_4 = arith.constant 0 : index
    %c0_5 = arith.constant 0 : index
    %5 = vector.load %arg4[%c0_3, %c0_4, %c0_5] : memref<1x16x128xbf16, #tpu.memory_space<vmem>>, vector<1x16x128xbf16>
    %6 = vector.shape_cast %5 : vector<1x16x128xbf16> to vector<16x128xbf16>
    %7 = tpu.concatenate %4, %6 in 1 : vector<16x128xbf16>, vector<16x128xbf16> -> vector<16x256xbf16>
    %8 = vector.extract_strided_slice %7 {offsets = [0, 0], sizes = [4, 128], strides = [1, 1]} : vector<16x256xbf16> to vector<4x128xbf16>
    %9 = vector.extract_strided_slice %7 {offsets = [4, 0], sizes = [4, 128], strides = [1, 1]} : vector<16x256xbf16> to vector<4x128xbf16>
    %10 = vector.extract_strided_slice %7 {offsets = [0, 1], sizes = [4, 128], strides = [1, 1]} : vector<16x256xbf16> to vector<4x128xbf16>
    %11 = vector.extract_strided_slice %7 {offsets = [4, 1], sizes = [4, 128], strides = [1, 1]} : vector<16x256xbf16> to vector<4x128xbf16>
    %12 = vector.extract_strided_slice %7 {offsets = [8, 0], sizes = [4, 128], strides = [1, 1]} : vector<16x256xbf16> to vector<4x128xbf16>
    %13 = vector.extract_strided_slice %7 {offsets = [12, 0], sizes = [4, 128], strides = [1, 1]} : vector<16x256xbf16> to vector<4x128xbf16>
    %14 = vector.extract_strided_slice %7 {offsets = [8, 1], sizes = [4, 128], strides = [1, 1]} : vector<16x256xbf16> to vector<4x128xbf16>
    %15 = vector.extract_strided_slice %7 {offsets = [12, 1], sizes = [4, 128], strides = [1, 1]} : vector<16x256xbf16> to vector<4x128xbf16>
    %16 = vector.extract_strided_slice %7 {offsets = [0, 9], sizes = [4, 128], strides = [1, 1]} : vector<16x256xbf16> to vector<4x128xbf16>
    %17 = vector.extract_strided_slice %7 {offsets = [4, 9], sizes = [4, 128], strides = [1, 1]} : vector<16x256xbf16> to vector<4x128xbf16>
    %18 = vector.extract_strided_slice %7 {offsets = [0, 10], sizes = [4, 128], strides = [1, 1]} : vector<16x256xbf16> to vector<4x128xbf16>
    %19 = vector.extract_strided_slice %7 {offsets = [4, 10], sizes = [4, 128], strides = [1, 1]} : vector<16x256xbf16> to vector<4x128xbf16>
    %20 = vector.extract_strided_slice %7 {offsets = [8, 9], sizes = [4, 128], strides = [1, 1]} : vector<16x256xbf16> to vector<4x128xbf16>
    %21 = vector.extract_strided_slice %7 {offsets = [12, 9], sizes = [4, 128], strides = [1, 1]} : vector<16x256xbf16> to vector<4x128xbf16>
    %22 = vector.extract_strided_slice %7 {offsets = [8, 10], sizes = [4, 128], strides = [1, 1]} : vector<16x256xbf16> to vector<4x128xbf16>
    %23 = vector.extract_strided_slice %7 {offsets = [12, 10], sizes = [4, 128], strides = [1, 1]} : vector<16x256xbf16> to vector<4x128xbf16>
    %24 = tpu.concatenate %8, %9, %10, %11, %12, %13, %14, %15, %16, %17, %18, %19, %20, %21, %22, %23 in 0 : vector<4x128xbf16>, vector<4x128xbf16>, vector<4x128xbf16>, vector<4x128xbf16>, vector<4x128xbf16>, vector<4x128xbf16>, vector<4x128xbf16>, vector<4x128xbf16>, vector<4x128xbf16>, vector<4x128xbf16>, vector<4x128xbf16>, vector<4x128xbf16>, vector<4x128xbf16>, vector<4x128xbf16>, vector<4x128xbf16>, vector<4x128xbf16> -> vector<64x128xbf16>
    %c0_6 = arith.constant 0 : index
    %c0_7 = arith.constant 0 : index
    %25 = vector.load %arg5[%c0_6, %c0_7] : memref<8x64xbf16, #tpu.memory_space<vmem>>, vector<8x64xbf16>
    %cst = arith.constant dense<0.000000e+00> : vector<8x128xf32>
    %26 = tpu.matmul %25, %24, %cst {dimension_numbers = #tpu.dot_dimension_numbers<[1], [0], [0], [1], [0, 0, 1, 1], [], []>} : vector<8x64xbf16>, vector<64x128xbf16>, vector<8x128xf32> -> vector<8x128xf32>
    %c0_8 = arith.constant 0 : index
    %c0_9 = arith.constant 0 : index
    %27 = vector.load %arg6[%c0_8, %c0_9] : memref<1x128xf32, #tpu.memory_space<vmem>>, vector<1x128xf32>
    %28 = vector.broadcast %27 : vector<1x128xf32> to vector<8x128xf32>
    %29 = arith.mulf %26, %28 : vector<8x128xf32>
    %30 = arith.mulf %29, %29 : vector<8x128xf32>
    %c0_10 = arith.constant 0 : index
    %c0_11 = arith.constant 0 : index
    %31 = vector.load %arg9[%c0_10, %c0_11] : memref<8x128xf32, #tpu.memory_space<vmem>>, vector<8x128xf32>
    %32 = arith.addf %31, %29 : vector<8x128xf32>
    %c0_12 = arith.constant 0 : index
    %c0_13 = arith.constant 0 : index
    %33 = vector.load %arg9[%c0_12, %c0_13] : memref<8x128xf32, #tpu.memory_space<vmem>>, vector<8x128xf32>
    tpu.vector_store %arg9[%c0_12, %c0_13], %32 {strides = array<i32>} : memref<8x128xf32, #tpu.memory_space<vmem>>, vector<8x128xf32>,
    %c0_14 = arith.constant 0 : index
    %c0_15 = arith.constant 0 : index
    %34 = vector.load %arg10[%c0_14, %c0_15] : memref<8x128xf32, #tpu.memory_space<vmem>>, vector<8x128xf32>
    %35 = arith.addf %34, %30 : vector<8x128xf32>
    %c0_16 = arith.constant 0 : index
    %c0_17 = arith.constant 0 : index
    %36 = vector.load %arg10[%c0_16, %c0_17] : memref<8x128xf32, #tpu.memory_space<vmem>>, vector<8x128xf32>
    tpu.vector_store %arg10[%c0_16, %c0_17], %35 {strides = array<i32>} : memref<8x128xf32, #tpu.memory_space<vmem>>, vector<8x128xf32>,
    %37 = arith.truncf %26 : vector<8x128xf32> to vector<8x128xbf16>
    %38 = arith.index_cast %arg2 : i32 to index
    %c0_18 = arith.constant 0 : index
    %c0_19 = arith.constant 0 : index
    %39 = vector.load %arg8[%38, %c0_18, %c0_19] : memref<1x8x128xbf16, #tpu.memory_space<vmem>>, vector<1x8x128xbf16>
    %40 = vector.shape_cast %39 : vector<1x8x128xbf16> to vector<8x128xbf16>
    %41 = vector.shape_cast %37 : vector<8x128xbf16> to vector<1x8x128xbf16>
    tpu.vector_store %arg8[%38, %c0_18, %c0_19], %41 {strides = array<i32>} : memref<1x8x128xbf16, #tpu.memory_space<vmem>>, vector<1x8x128xbf16>,
    %c0_i32_20 = arith.constant 0 : i32
    %42 = arith.cmpi eq, %arg2, %c0_i32_20 : i32
    %43 = arith.extui %42 : i1 to i32
    %c0_i32_21 = arith.constant 0 : i32
    %44 = arith.cmpi ne, %43, %c0_i32_21 : i32
    scf.if %44 {
      %c0_22 = arith.constant 0 : index
      %c0_23 = arith.constant 0 : index
      %45 = vector.load %arg9[%c0_22, %c0_23] : memref<8x128xf32, #tpu.memory_space<vmem>>, vector<8x128xf32>
      %cst_24 = arith.constant dense<0.000000e+00> : vector<8xf32>
      %46 = vector.multi_reduction <add>, %45, %cst_24 [1] : vector<8x128xf32> to vector<8xf32>
      %47 = vector.shape_cast %46 : vector<8xf32> to vector<8x1xf32>
      %cst_25 = arith.constant 1.562500e-02 : f32
      %48 = vector.broadcast %cst_25 : f32 to vector<8x1xf32>
      %49 = arith.mulf %47, %48 : vector<8x1xf32>
      %c0_26 = arith.constant 0 : index
      %c0_27 = arith.constant 0 : index
      %50 = vector.load %arg10[%c0_26, %c0_27] : memref<8x128xf32, #tpu.memory_space<vmem>>, vector<8x128xf32>
      %cst_28 = arith.constant dense<0.000000e+00> : vector<8xf32>
      %51 = vector.multi_reduction <add>, %50, %cst_28 [1] : vector<8x128xf32> to vector<8xf32>
      %52 = vector.shape_cast %51 : vector<8xf32> to vector<8x1xf32>
      %cst_29 = arith.constant 1.562500e-02 : f32
      %53 = vector.broadcast %cst_29 : f32 to vector<8x1xf32>
      %54 = arith.mulf %52, %53 : vector<8x1xf32>
      %55 = arith.mulf %49, %49 : vector<8x1xf32>
      %56 = arith.subf %54, %55 : vector<8x1xf32>
      %cst_30 = arith.constant 0.000000e+00 : f32
      %57 = vector.broadcast %cst_30 : f32 to vector<8x1xf32>
      %58 = arith.maximumf %56, %57 : vector<8x1xf32>
      %cst_31 = arith.constant 9.99999974E-6 : f32
      %59 = vector.broadcast %cst_31 : f32 to vector<8x1xf32>
      %60 = arith.addf %58, %59 : vector<8x1xf32>
      %61 = math.rsqrt %60 : vector<8x1xf32>
      %c0_32 = arith.constant 0 : index
      %c0_33 = arith.constant 0 : index
      %c0_34 = arith.constant 0 : index
      %62 = vector.load %arg8[%c0_32, %c0_33, %c0_34] : memref<1x8x128xbf16, #tpu.memory_space<vmem>>, vector<1x8x128xbf16>
      %63 = vector.shape_cast %62 : vector<1x8x128xbf16> to vector<8x128xbf16>
      %64 = arith.extf %63 : vector<8x128xbf16> to vector<8x128xf32>
      %65 = vector.broadcast %49 : vector<8x1xf32> to vector<8x128xf32>
      %66 = arith.subf %64, %65 : vector<8x128xf32>
      %67 = vector.broadcast %61 : vector<8x1xf32> to vector<8x128xf32>
      %68 = arith.mulf %66, %67 : vector<8x128xf32>
      %cst_35 = arith.constant 0.000000e+00 : f32
      %69 = vector.broadcast %cst_35 : f32 to vector<8x128xf32>
      %70 = arith.maximumf %68, %69 : vector<8x128xf32>
      %71 = arith.truncf %70 : vector<8x128xf32> to vector<8x128xbf16>
      %c0_36 = arith.constant 0 : index
      %c0_37 = arith.constant 0 : index
      %c0_38 = arith.constant 0 : index
      %72 = vector.load %arg7[%c0_36, %c0_37, %c0_38] : memref<1x8x128xbf16, #tpu.memory_space<vmem>>, vector<1x8x128xbf16>
      %73 = vector.shape_cast %72 : vector<1x8x128xbf16> to vector<8x128xbf16>
      %74 = vector.shape_cast %71 : vector<8x128xbf16> to vector<1x8x128xbf16>
      tpu.vector_store %arg7[%c0_36, %c0_37, %c0_38], %74 {strides = array<i32>} : memref<1x8x128xbf16, #tpu.memory_space<vmem>>, vector<1x8x128xbf16>,
    } else {
    }
    return
  }
  func.func @transform_0(%arg0: i32, %arg1: i32, %arg2: i32) -> (i32, i32, i32) {
    %c0_i32 = arith.constant 0 : i32
    %c0_i32_0 = arith.constant 0 : i32
    return %arg0, %c0_i32, %arg2 : i32, i32, i32
  }
  func.func @transform_1(%arg0: i32, %arg1: i32, %arg2: i32) -> (i32, i32, i32) {
    %c1_i32 = arith.constant 1 : i32
    %0 = arith.addi %arg2, %c1_i32 : i32
    %c1_i32_0 = arith.constant 1 : i32
    %1 = arith.muli %0, %c1_i32_0 : i32
    %c0_i32 = arith.constant 0 : i32
    %c0_i32_1 = arith.constant 0 : i32
    return %arg0, %c0_i32, %1 : i32, i32, i32
  }
  func.func @transform_2(%arg0: i32, %arg1: i32, %arg2: i32) -> (i32, i32) {
    %c0_i32 = arith.constant 0 : i32
    %c0_i32_0 = arith.constant 0 : i32
    return %arg1, %c0_i32 : i32, i32
  }
  func.func @transform_3(%arg0: i32, %arg1: i32, %arg2: i32) -> (i32, i32) {
    %c0_i32 = arith.constant 0 : i32
    %c0_i32_0 = arith.constant 0 : i32
    return %c0_i32, %arg2 : i32, i32
  }
  func.func @transform_4(%arg0: i32, %arg1: i32, %arg2: i32) -> (i32, i32, i32) {
    %c0_i32 = arith.constant 0 : i32
    %c0_i32_0 = arith.constant 0 : i32
    return %arg0, %arg1, %c0_i32 : i32, i32, i32
  }
}

</mosaic_0001>

<llo_original>
// kernel: tpu_custom_call.1
$region0: #{tpu_custom_call.1}
  #allocation0 [shape = 'u32[]', space=smem, size = 0x4, offset = 0x4, fixed_abs, tag = 'smem constant byte address 0x4 - core index']
  #allocation1 [shape = 'u32[144,128]{1,0:T(1,128)}', space=vmem, size = 0x12000, scoped, tag = 'internal scratch']
  #allocation2 [shape = 'bf16[1,8,128]{2,1,0:T(8,128)(2,1)}', space=vmem, size = 0x800, scoped, tag = 'scratch operand']
  #allocation3 [shape = 'f32[8,128]{1,0:T(8,128)}', space=vmem, size = 0x1000, scoped, tag = 'scratch operand']
  #allocation4 [shape = 'f32[8,128]{1,0:T(8,128)}', space=vmem, size = 0x1000, scoped, tag = 'scratch operand']
  %s0 = inlined_call_operand.hbm [shape: bf16[2,16,256], index: 0, kind: input, shape index: {}]
  %s1 = inlined_call_operand.hbm [shape: bf16[2,16,256], index: 1, kind: input, shape index: {}]
  %s2 = inlined_call_operand.vmem [shape: bf16[8,64], index: 2, kind: input, shape index: {}]
  %s3 = inlined_call_operand.vmem [shape: f32[1,128], index: 3, kind: input, shape index: {}]
  %s4 = inlined_call_operand.hbm [shape: bf16[2,8,128], index: 4, kind: output, shape index: {}]
  %s5 = sld [smem:[#allocation0]]
  $region65: #{tpu_custom_call.1} parent=0
    _
  %s7 = ssub.s32 1, %s5
  %s8 = scalar_select 0, %s7, %s5
  $region1: #{tpu_custom_call.1} parent=0
    #allocation5 [shape = 'u8[8192]{0}', space=vmem, size = 0x2000, scoped, tag = 'input window, operand 0']
    #allocation6 [shape = 's32[2]{0}', space=sflag, size = 0x8, scoped, tag = 'scoped memory for tpu_custom_call.1']
    #allocation7 [shape = 's32[2]{0}', space=sflag, size = 0x8, scoped, tag = 'scoped memory for tpu_custom_call.1']
    #allocation8 [shape = 'u8[8192]{0}', space=vmem, size = 0x2000, scoped, tag = 'input window, operand 1']
    #allocation9 [shape = 's32[2]{0}', space=sflag, size = 0x8, scoped, tag = 'scoped memory for tpu_custom_call.1']
    #allocation10 [shape = 'u8[4096]{0}', space=vmem, size = 0x1000, scoped, tag = 'output window, operand 0']
    %9 = vsyncpa [#allocation6], 0
    %s10 = scalar_lea.sflag [#allocation6], 1
    %11 = vsyncpa %s10, 0
    %12 = vsyncpa [#allocation9], 0
    %s13 = scalar_lea.sflag [#allocation9], 1
    %14 = vsyncpa %s13, 0
    %15 = vsyncpa [#allocation7], 0
    %s16 = scalar_lea.sflag [#allocation7], 1
    %17 = vsyncpa %s16, 0
    loop: start=0, step=1, limit=4
    $region2: #{tpu_custom_call.1} parent=1 // loop_pre_header
      _
    $region3: #{tpu_custom_call.1} parent=1 // loop_header
      %s19 = sphi 0, %s23
      %p20 = scmp.ge.s32.totalorder %s19, 4
      %s26 = sphi 0, %s45
      %s27 = sphi 0, %s41
      %s28 = sphi 0, %s37
      %s29 = sphi 0, %s26
      %s30 = sphi 0, %s27
      %s31 = sphi 0, %s28
      %s32 = sphi 0, %s29
      %s33 = sphi 0, %s30
      %s34 = sphi 0, %s31
      %s50 = sphi 0, %s52
      %s53 = sphi 0, %s50
      %s54 = sphi 0, %s53
      %s70 = sphi 0, %s54
      %s80 = sphi 0, %s82
      %s83 = sphi 0, %s80
      %s84 = sphi 0, %s83
      %s100 = sphi 0, %s84
      %s106 = sphi 0, %s108
      %s109 = sphi 0, %s106
      %s110 = sphi 0, %s109
      %s126 = sphi 0, %s110
      %s132 = sphi 0, %s134
      %s135 = sphi 0, %s132
      %s136 = sphi 0, %s135
      %s152 = sphi 0, %s136
      %s160 = sphi 0, %s162
      %s163 = sphi 0, %s160
      %s164 = sphi 0, %s163
      %s180 = sphi 0, %s164
    $region4: #{tpu_custom_call.1} parent=1 // loop_header_branch
      %22 = sbr.rel (%p20) target = $region8
    $region5: #{tpu_custom_call.1} parent=1 // loop_body
      %s24 = ssub.s32 %s19, 1
      %s25 = ssub.s32 %s19, 2
      %s35 = sadd.s32 1, %s28
      %p36 = scmp.ge.s32.totalorder %s35, 1
      %s37 = scalar_select %p36, 0, %s35
      %s38 = sadd.s32 1, %s27
      %s39 = scalar_select %p36, %s38, %s27
      %p40 = scmp.ge.s32.totalorder %s39, 1
      %s41 = scalar_select %p40, 0, %s39
      %s42 = sadd.s32 1, %s26
      %s43 = scalar_select %p40, %s42, %s26
      %p44 = scmp.ge.s32.totalorder %s43, 2
      %s45 = scalar_select %p44, 0, %s43
      %s46 = ssub.s32 %s26, %s45
      %s47 = ssub.s32 %s28, %s37
      %s48 = sor.u32 %s46, %s47
      %p49 = scmp.eq.s32.totalorder %s48, 0
      %s51 = sadd.s32 %s50, 1
      %s52 = scalar_select %p49, %s50, %s51
      %p55 = pneg %p49
      %p56 = scmp.eq.s32.totalorder %s19, 1
      %p57 = por %p55, %p56
      %p58 = scmp.ne.s32.totalorder %s50, %s53
      %p59 = scmp.eq.s32.totalorder %s19, 0
      %p60 = por %p58, %p59
      %p61 = scmp.ne.s32.totalorder %s50, %s53
      %p62 = scmp.eq.s32.totalorder %s24, 1
      %p63 = por %p61, %p62
      %p64 = scmp.ne.s32.totalorder %s53, %s54
      %p65 = scmp.eq.s32.totalorder %s24, 0
      %p66 = por %p64, %p65
      %p67 = scmp.ne.s32.totalorder %s53, %s54
      %p68 = scmp.eq.s32.totalorder %s25, 1
      %p69 = por %p67, %p68
      %p71 = scmp.ne.s32.totalorder %s54, %s70
      %p72 = scmp.eq.s32.totalorder %s25, 0
      %p73 = por %p71, %p72
      %s74 = sadd.s32 %s28, 1
      %s75 = sadd.s32 %s37, 1
      %s76 = ssub.s32 %s26, %s45
      %s77 = ssub.s32 %s74, %s75
      %s78 = sor.u32 %s76, %s77
      %p79 = scmp.eq.s32.totalorder %s78, 0
      %s81 = sadd.s32 %s80, 1
      %s82 = scalar_select %p79, %s80, %s81
      %p85 = pneg %p79
      %p86 = scmp.eq.s32.totalorder %s19, 1
      %p87 = por %p85, %p86
      %p88 = scmp.ne.s32.totalorder %s80, %s83
      %p89 = scmp.eq.s32.totalorder %s19, 0
      %p90 = por %p88, %p89
      %p91 = scmp.ne.s32.totalorder %s80, %s83
      %p92 = scmp.eq.s32.totalorder %s24, 1
      %p93 = por %p91, %p92
      %p94 = scmp.ne.s32.totalorder %s83, %s84
      %p95 = scmp.eq.s32.totalorder %s24, 0
      %p96 = por %p94, %p95
      %p97 = scmp.ne.s32.totalorder %s83, %s84
      %p98 = scmp.eq.s32.totalorder %s25, 1
      %p99 = por %p97, %p98
      %p101 = scmp.ne.s32.totalorder %s84, %s100
      %p102 = scmp.eq.s32.totalorder %s25, 0
      %p103 = por %p101, %p102
      %s104 = ssub.s32 %s27, %s41
      %p105 = scmp.eq.s32.totalorder %s104, 0
      %s107 = sadd.s32 %s106, 1
      %s108 = scalar_select %p105, %s106, %s107
      %p111 = pneg %p105
      %p112 = scmp.eq.s32.totalorder %s19, 1
      %p113 = por %p111, %p112
      %p114 = scmp.ne.s32.totalorder %s106, %s109
      %p115 = scmp.eq.s32.totalorder %s19, 0
      %p116 = por %p114, %p115
      %p117 = scmp.ne.s32.totalorder %s106, %s109
      %p118 = scmp.eq.s32.totalorder %s24, 1
      %p119 = por %p117, %p118
      %p120 = scmp.ne.s32.totalorder %s109, %s110
      %p121 = scmp.eq.s32.totalorder %s24, 0
      %p122 = por %p120, %p121
      %p123 = scmp.ne.s32.totalorder %s109, %s110
      %p124 = scmp.eq.s32.totalorder %s25, 1
      %p125 = por %p123, %p124
      %p127 = scmp.ne.s32.totalorder %s110, %s126
      %p128 = scmp.eq.s32.totalorder %s25, 0
      %p129 = por %p127, %p128
      %s130 = ssub.s32 %s28, %s37
      %p131 = scmp.eq.s32.totalorder %s130, 0
      %s133 = sadd.s32 %s132, 1
      %s134 = scalar_select %p131, %s132, %s133
      %p137 = pneg %p131
      %p138 = scmp.eq.s32.totalorder %s19, 1
      %p139 = por %p137, %p138
      %p140 = scmp.ne.s32.totalorder %s132, %s135
      %p141 = scmp.eq.s32.totalorder %s19, 0
      %p142 = por %p140, %p141
      %p143 = scmp.ne.s32.totalorder %s132, %s135
      %p144 = scmp.eq.s32.totalorder %s24, 1
      %p145 = por %p143, %p144
      %p146 = scmp.ne.s32.totalorder %s135, %s136
      %p147 = scmp.eq.s32.totalorder %s24, 0
      %p148 = por %p146, %p147
      %p149 = scmp.ne.s32.totalorder %s135, %s136
      %p150 = scmp.eq.s32.totalorder %s25, 1
      %p151 = por %p149, %p150
      %p153 = scmp.ne.s32.totalorder %s136, %s152
      %p154 = scmp.eq.s32.totalorder %s25, 0
      %p155 = por %p153, %p154
      %s156 = ssub.s32 %s26, %s45
      %s157 = ssub.s32 %s27, %s41
      %s158 = sor.u32 %s156, %s157
      %p159 = scmp.eq.s32.totalorder %s158, 0
      %s161 = sadd.s32 %s160, 1
      %s162 = scalar_select %p159, %s160, %s161
      %p165 = pneg %p159
      %p166 = scmp.eq.s32.totalorder %s19, 1
      %p167 = por %p165, %p166
      %p168 = scmp.ne.s32.totalorder %s160, %s163
      %p169 = scmp.eq.s32.totalorder %s19, 0
      %p170 = por %p168, %p169
      %p171 = scmp.ne.s32.totalorder %s160, %s163
      %p172 = scmp.eq.s32.totalorder %s24, 1
      %p173 = por %p171, %p172
      %p174 = scmp.ne.s32.totalorder %s163, %s164
      %p175 = scmp.eq.s32.totalorder %s24, 0
      %p176 = por %p174, %p175
      %p177 = scmp.ne.s32.totalorder %s163, %s164
      %p178 = scmp.eq.s32.totalorder %s25, 1
      %p179 = por %p177, %p178
      %p181 = scmp.ne.s32.totalorder %s164, %s180
      %p182 = scmp.eq.s32.totalorder %s25, 0
      %p183 = por %p181, %p182
      %p184 = scmp.le.s32.totalorder 1, %s19
      %p185 = scmp.lt.s32.totalorder %s19, 3
      %p186 = pnand %p184, %p185
      %p187 = pneg %p186
      // Predicated region
      $region9: #{tpu_custom_call.1} parent=5 // pred_check
        _
      $region10: #{tpu_custom_call.1} parent=5 // pred_check_branch
        %189 = sbr.rel (%p186) target = $region12
      $region11: #{tpu_custom_call.1} parent=5 // pred_region
        %s190 = ssub.s32 %s19, 1
        // Predicated region
        $region13: #{tpu_custom_call.1} parent=11 // pred_check
          %p191 = pneg %p122
        $region14: #{tpu_custom_call.1} parent=11 // pred_check_branch
          %193 = sbr.rel (%p191) target = $region16
        $region15: #{tpu_custom_call.1} parent=11 // pred_region
          %p194 = scmp.lt.s32.totalorder %s30, 0
          %s195 = scalar_select %p194, %s30, 0
          %s196 = smul.addr %s195, 4
          %s197 = scalar_lea.vmem %s2, %s196
        $region16: #{tpu_custom_call.1} parent=11 // pred_fallthru
          _
        // Predicated region
        $region17: #{tpu_custom_call.1} parent=11 // pred_check
          %p198 = pneg %p148
        $region18: #{tpu_custom_call.1} parent=11 // pred_check_branch
          %200 = sbr.rel (%p198) target = $region20
        $region19: #{tpu_custom_call.1} parent=11 // pred_region
          %p201 = scmp.lt.s32.totalorder %s31, 0
          %s202 = scalar_select %p201, %s31, 0
          %s203 = scalar_lea.vmem %s3, %s202
        $region20: #{tpu_custom_call.1} parent=11 // pred_fallthru
          _
      $region12: #{tpu_custom_call.1} parent=5 // pred_fallthru
        _
      %p204 = scmp.lt.s32.totalorder %s19, 2
      // Predicated region
      $region21: #{tpu_custom_call.1} parent=5 // pred_check
        %p205 = pneg %p204
      $region22: #{tpu_custom_call.1} parent=5 // pred_check_branch
        %207 = sbr.rel (%p205) target = $region24
      $region23: #{tpu_custom_call.1} parent=5 // pred_region
        // Predicated region
        $region25: #{tpu_custom_call.1} parent=23 // pred_check
          %p208 = pneg %p60
        $region26: #{tpu_custom_call.1} parent=23 // pred_check_branch
          %210 = sbr.rel (%p208) target = $region28
        $region27: #{tpu_custom_call.1} parent=23 // pred_region
          %s211 = sand.u32 %s50, 1
          %s212 = scalar_lea.sflag [#allocation6], %s211
          %s213 = sand.u32 %s50, 1
          %s214 = smul.addr %s213, 8
          %s215 = scalar_lea.vmem [#allocation5], %s214
          %s217 = ssub.s32 128, 128
          %218 = vsyncadd %s212, %s217
          %s219 = smul.addr %s26, 4
          %s220 = sadd.s32 %s28, %s219
          %s221 = smul.addr %s220, 64
          %s222 = scalar_lea.hbm %s0, %s221
          %s223 = sshll.u32 %s215, 4
          %s224 = int_to_ptr.vmem [resolvable:$true] %s223
          %229 = dma.hbm_to_vmem [thread:$0]  %s222, 128, %s224, %s212, 128, 64, 4
        $region28: #{tpu_custom_call.1} parent=23 // pred_fallthru
          _
        // Predicated region
        $region29: #{tpu_custom_call.1} parent=23 // pred_check
          %p230 = pneg %p90
        $region30: #{tpu_custom_call.1} parent=23 // pred_check_branch
          %232 = sbr.rel (%p230) target = $region32
        $region31: #{tpu_custom_call.1} parent=23 // pred_region
          %s233 = sand.u32 %s80, 1
          %s234 = scalar_lea.sflag [#allocation9], %s233
          %s235 = sand.u32 %s80, 1
          %s236 = smul.addr %s235, 8
          %s237 = scalar_lea.vmem [#allocation8], %s236
          %s238 = sadd.s32 %s28, 1
          %s240 = ssub.s32 128, 128
          %241 = vsyncadd %s234, %s240
          %s242 = smul.addr %s26, 4
          %s243 = sadd.s32 %s238, %s242
          %s244 = smul.addr %s243, 64
          %s245 = scalar_lea.hbm %s1, %s244
          %s246 = sshll.u32 %s237, 4
          %s247 = int_to_ptr.vmem [resolvable:$true] %s246
          %252 = dma.hbm_to_vmem [thread:$0]  %s245, 128, %s247, %s234, 128, 64, 4
        $region32: #{tpu_custom_call.1} parent=23 // pred_fallthru
          _
      $region24: #{tpu_custom_call.1} parent=5 // pred_fallthru
        _
      %p253 = scmp.le.s32.totalorder 1, %s19
      %p254 = scmp.lt.s32.totalorder %s19, 3
      %p255 = pnand %p253, %p254
      %p256 = pneg %p255
      // Predicated region
      $region33: #{tpu_custom_call.1} parent=5 // pred_check
        _
      $region34: #{tpu_custom_call.1} parent=5 // pred_check_branch
        %258 = sbr.rel (%p255) target = $region36
      $region35: #{tpu_custom_call.1} parent=5 // pred_region
        %s259 = ssub.s32 %s19, 1
        %s260 = sand.u32 %s53, 1
        %s261 = scalar_lea.sflag [#allocation6], %s260
        %s262 = sand.u32 %s53, 1
        %s263 = smul.addr %s262, 8
        %s264 = scalar_lea.vmem [#allocation5], %s263
        // Predicated region
        $region37: #{tpu_custom_call.1} parent=35 // pred_check
          %p265 = pneg %p66
        $region38: #{tpu_custom_call.1} parent=35 // pred_check_branch
          %267 = sbr.rel (%p265) target = $region40
        $region39: #{tpu_custom_call.1} parent=35 // pred_region
          %268 = dma.done %s261, 128
        $region40: #{tpu_custom_call.1} parent=35 // pred_fallthru
          _
        %s269 = sand.u32 %s83, 1
        %s270 = scalar_lea.sflag [#allocation9], %s269
        %s271 = sand.u32 %s83, 1
        %s272 = smul.addr %s271, 8
        %s273 = scalar_lea.vmem [#allocation8], %s272
        // Predicated region
        $region41: #{tpu_custom_call.1} parent=35 // pred_check
          %p274 = pneg %p96
        $region42: #{tpu_custom_call.1} parent=35 // pred_check_branch
          %276 = sbr.rel (%p274) target = $region44
        $region43: #{tpu_custom_call.1} parent=35 // pred_region
          %277 = dma.done %s270, 128
        $region44: #{tpu_custom_call.1} parent=35 // pred_fallthru
          _
        %s278 = sand.u32 %s53, 1
        %s279 = scalar_lea.sflag [#allocation6], %s278
        %s280 = sand.u32 %s53, 1
        %s281 = smul.addr %s280, 8
        %s282 = scalar_lea.vmem [#allocation5], %s281
        %p283 = pneg %p66
        %p284 = pneg %p63
        %s285 = sand.u32 %s83, 1
        %s286 = scalar_lea.sflag [#allocation9], %s285
        %s287 = sand.u32 %s83, 1
        %s288 = smul.addr %s287, 8
        %s289 = scalar_lea.vmem [#allocation8], %s288
        %p290 = pneg %p96
        %p291 = pneg %p93
        %p292 = scmp.lt.s32.totalorder %s30, 0
        %s293 = scalar_select %p292, %s30, 0
        %s294 = smul.addr %s293, 4
        %s295 = scalar_lea.vmem %s2, %s294
        %p296 = pneg %p122
        %p297 = pneg %p119
        %p298 = scmp.lt.s32.totalorder %s31, 0
        %s299 = scalar_select %p298, %s31, 0
        %s300 = scalar_lea.vmem %s3, %s299
        %p301 = pneg %p148
        %p302 = pneg %p145
        %p303 = pneg %p176
        %p304 = pneg %p173
        %s305 = sand.u32 %s163, 1
        %s306 = scalar_lea.sflag [#allocation7], %s305
        %s307 = sand.u32 %s163, 1
        %s308 = smul.addr %s307, 4
        %s309 = scalar_lea.vmem [#allocation10], %s308
        %s310 = sadd.s32 %s31, 1
        %p311 = scmp.lt.s32.totalorder %s30, 0
        %s312 = scalar_select %p311, %s30, 0
        %s313 = smul.addr %s312, 4
        %s314 = scalar_lea.vmem %s2, %s313
        %p315 = scmp.lt.s32.totalorder %s31, 0
        %s316 = scalar_select %p315, %s31, 0
        %s317 = scalar_lea.vmem %s3, %s316
        %p319 = scmp.eq.s32.totalorder %s31, 0
        // Predicated region
        $region45: #{tpu_custom_call.1} parent=35 // pred_check
          %p320 = pneg %p319
        $region46: #{tpu_custom_call.1} parent=35 // pred_check_branch
          %322 = sbr.rel (%p320) target = $region48
        $region47: #{tpu_custom_call.1} parent=35 // pred_region
          %323 = vst [vmem:[#allocation3] sm:$0xff] 0.0
          %324 = vst [vmem:[#allocation4] sm:$0xff] 0.0
        $region48: #{tpu_custom_call.1} parent=35 // pred_fallthru
          _
        %v325 = vld [vmem:[%s264] sm:$0xf]
        %v326 = vld [vmem:[%s264 + $0x4] sm:$0xf]
        %v327 = vld [vmem:[%s273] sm:$0xf]
        %v328 = vld [vmem:[%s273 + $0x4] sm:$0xf]
        %v331 = vunpack.c.l.b16 %v325
        %v332 = vunpack.c.l.b16 %v326
        %v333 = vpack.c.b16 %v332, %v331
        %v336 = vunpack.c.l.b16 %v327
        %v337 = vunpack.c.l.b16 %v328
        %v338 = vpack.c.b16 %v337, %v336
        %v339 = vrot.slane %v333, 4
        %v340 = vrot.slane %v338, 4
        %341 = vrot.lane.b32.xlu0 %v339, 127
        %v342 = vpop.permute.xlu0 %341
        %343 = vrot.lane.b32.xlu0 %v340, 127
        %v344 = vpop.permute.xlu0 %343
        %vm345 = vcmask 1039360
        %v346 = vsel %vm345, %v342, %v344
        %347 = vrot.lane.b32.xlu0 %v333, 127
        %v348 = vpop.permute.xlu0 %347
        %349 = vrot.lane.b32.xlu0 %v338, 127
        %v350 = vpop.permute.xlu0 %349
        %v351 = vsel %vm345, %v348, %v350
        %352 = vrot.lane.b32.xlu0 %v333, 119
        %v353 = vpop.permute.xlu0 %352
        %354 = vrot.lane.b32.xlu0 %v338, 119
        %v355 = vpop.permute.xlu0 %354
        %vm356 = vcmask 973824
        %v357 = vsel %vm356, %v353, %v355
        %358 = vrot.lane.b32.xlu0 %v339, 118
        %v359 = vpop.permute.xlu0 %358
        %360 = vrot.lane.b32.xlu0 %v340, 118
        %v361 = vpop.permute.xlu0 %360
        %vm362 = vcmask 965632
        %v363 = vsel %vm362, %v359, %v361
        %364 = vrot.lane.b32.xlu0 %v339, 119
        %v365 = vpop.permute.xlu0 %364
        %366 = vrot.lane.b32.xlu0 %v340, 119
        %v367 = vpop.permute.xlu0 %366
        %v368 = vsel %vm356, %v365, %v367
        %369 = vrot.lane.b32.xlu0 %v333, 118
        %v370 = vpop.permute.xlu0 %369
        %371 = vrot.lane.b32.xlu0 %v338, 118
        %v372 = vpop.permute.xlu0 %371
        %v373 = vsel %vm362, %v370, %v372
        %vm375 = vcmask 1043456
        %v377 = vsel %vm375, %v333, %v346
        %vm378 = vcmask 1045504
        %v379 = vsel %vm378, %v377, %v346
        %v383 = vsel %vm375, %v339, %v351
        %v384 = vsel %vm378, %v383, %v351
        %v388 = vsel %vm375, %v357, %v363
        %v389 = vsel %vm378, %v388, %v363
        %v393 = vsel %vm375, %v368, %v373
        %v394 = vsel %vm378, %v393, %v373
        %v396 = vld [vmem:[%s314] sm:$0xf]
        %vm397 = vcmask 523264
        %v399 = vsel %vm397, %v396, 0
        %401 = vmatprep.subr.bf16.mxu0 0
        %402 = vmatpush1.bf16.msra.mxu0 %v379
        %403 = vmatprep.subr.bf16.mxu0 0
        %404 = vmatpush1.bf16.msra.mxu0 %v384
        %405 = vmatprep.subr.bf16.mxu0 0
        %406 = vmatpush1.bf16.msra.mxu0 %v389
        %407 = vmatprep.subr.bf16.mxu0 0
        %408 = vmatpush1.bf16.msra.mxu0 %v394
        %409 = vmatprep.subr.bf16.mxu0 0
        %410 = vmatpush1.bf16.msra.mxu0 0
        %411 = vmatprep.subr.bf16.mxu0 0
        %412 = vmatpush1.bf16.msra.mxu0 0
        %413 = vmatprep.subr.bf16.mxu0 0
        %414 = vmatpush1.bf16.msra.mxu0 0
        %415 = vmatprep.subr.bf16.mxu0 0
        %416 = vmatpush1.bf16.msra.mxu0 0
        %417 = vmatprep.subr.bf16.mxu0 0
        %418 = vmatpush1.bf16.msra.mxu0 0
        %419 = vmatprep.subr.bf16.mxu0 0
        %420 = vmatpush1.bf16.msra.mxu0 0
        %421 = vmatprep.subr.bf16.mxu0 0
        %422 = vmatpush1.bf16.msra.mxu0 0
        %423 = vmatprep.subr.bf16.mxu0 0
        %424 = vmatpush1.bf16.msra.mxu0 0
        %425 = vmatprep.subr.bf16.mxu0 0
        %426 = vmatpush1.bf16.msra.mxu0 0
        %427 = vmatprep.subr.bf16.mxu0 0
        %428 = vmatpush1.bf16.msra.mxu0 0
        %429 = vmatprep.subr.bf16.mxu0 0
        %430 = vmatpush1.bf16.msra.mxu0 0
        %431 = vmatprep.subr.bf16.mxu0 0
        %432 = vmatpush1.bf16.msra.mxu0 0
        %433 = vmatprep.mubr.bf16.mxu0 0
        %434 = vmatmul.mubr.bf16.gmra.mrb[0].mxu0 %v399
        %v435 = vpop.f32.mrb[0].mxu0
        %v436 = vadd.f32 0.0, %v435
        %v437 = vpop.f32.mrb[0].mxu0
        %v438 = vpop.f32.mrb[0].mxu0
        %v439 = vpop.f32.mrb[0].mxu0
        %440 = vdwg.mxu0
        %v441 = vld [vmem:[%s317] sm:$0x1]
        %v443 = vlaneseq
        %v444 = vshrl.u32 %v443, 7
        %v445 = vsub.s32 0, %v444
        %v446 = vrot.slane %v441, %v445
        %v448 = vmul.f32 %v436, %v446
        %v449 = vmul.f32 %v448, %v448
        %v450 = vld [vmem:[#allocation3] sm:$0xff]
        %v451 = vadd.f32 %v450, %v448
        %452 = vst [vmem:[#allocation3] sm:$0xff] %v451
        %v453 = vld [vmem:[#allocation4] sm:$0xff]
        %v454 = vadd.f32 %v453, %v449
        %455 = vst [vmem:[#allocation4] sm:$0xff] %v454
        %v456 = vpack.c.bf16 %v436, %v436
        %s457 = smul.addr %s31, 4
        %s458 = scalar_lea.vmem [#allocation2], %s457
        %459 = vst [vmem:[%s458] sm:$0xf] %v456
        // Predicated region
        $region49: #{tpu_custom_call.1} parent=35 // pred_check
          %p460 = pneg %p319
        $region50: #{tpu_custom_call.1} parent=35 // pred_check_branch
          %462 = sbr.rel (%p460) target = $region52
        $region51: #{tpu_custom_call.1} parent=35 // pred_region
          %v463 = vld [vmem:[#allocation3] sm:$0xff]
          %464 = vadd.xlane.f32.xlu0 %v463
          %v465 = vpop.xlane.xlu0 %464
          %v466 = vmul.f32 %v465, 0.015625
          %v467 = vld [vmem:[#allocation4] sm:$0xff]
          %468 = vadd.xlane.f32.xlu0 %v467
          %v469 = vpop.xlane.xlu0 %468
          %v470 = vmul.f32 %v469, 0.015625
          %v471 = vmul.f32 %v466, %v466
          %v472 = vsub.f32 %v470, %v471
          %v473 = vmax.f32 %v472, 0.0
          %v474 = vadd.f32 %v473, 1e-05
          %v475 = vrsqrt.pop %v474
          %v476 = vld [vmem:[#allocation2] sm:$0xf]
          %v477 = vunpack.c.l.bf16 %v476
          %v478 = vsub.f32 %v477, %v466
          %v479 = vmul.f32 %v478, %v475
          %v480 = vmax.f32 %v479, 0.0
          %v481 = vpack.c.bf16 %v480, %v480
          %482 = vst [vmem:[%s309] sm:$0xf] %v481
        $region52: #{tpu_custom_call.1} parent=35 // pred_fallthru
          _
        %s483 = sand.u32 %s163, 1
        %s484 = scalar_lea.sflag [#allocation7], %s483
        %s485 = sand.u32 %s163, 1
        %s486 = smul.addr %s485, 4
        %s487 = scalar_lea.vmem [#allocation10], %s486
        // Predicated region
        $region53: #{tpu_custom_call.1} parent=35 // pred_check
          %p488 = pneg %p173
        $region54: #{tpu_custom_call.1} parent=35 // pred_check_branch
          %490 = sbr.rel (%p488) target = $region56
        $region55: #{tpu_custom_call.1} parent=35 // pred_region
          %s492 = ssub.s32 64, 64
          %493 = vsyncadd %s484, %s492
          %s494 = sadd.s32 %s30, %s29
          %s495 = smul.addr %s494, 64
          %s496 = scalar_lea.hbm %s4, %s495
          %s498 = sshll.u32 %s487, 4
          %s499 = int_to_ptr.vmem [resolvable:$true] %s498
          %501 = dma.vmem_to_hbm [thread:$0]  %s499, 64, %s496, %s484
        $region56: #{tpu_custom_call.1} parent=35 // pred_fallthru
          _
      $region36: #{tpu_custom_call.1} parent=5 // pred_fallthru
        _
      %p502 = scmp.le.s32.totalorder 2, %s19
      // Predicated region
      $region57: #{tpu_custom_call.1} parent=5 // pred_check
        %p503 = pneg %p502
      $region58: #{tpu_custom_call.1} parent=5 // pred_check_branch
        %505 = sbr.rel (%p503) target = $region60
      $region59: #{tpu_custom_call.1} parent=5 // pred_region
        %s506 = ssub.s32 %s19, 2
        // Predicated region
        $region61: #{tpu_custom_call.1} parent=59 // pred_check
          %p507 = pneg %p179
        $region62: #{tpu_custom_call.1} parent=59 // pred_check_branch
          %509 = sbr.rel (%p507) target = $region64
        $region63: #{tpu_custom_call.1} parent=59 // pred_region
          %s510 = sand.u32 %s164, 1
          %s511 = scalar_lea.sflag [#allocation7], %s510
          %s512 = sand.u32 %s164, 1
          %s513 = smul.addr %s512, 4
          %s514 = scalar_lea.vmem [#allocation10], %s513
          %515 = dma.done %s511, 64
        $region64: #{tpu_custom_call.1} parent=59 // pred_fallthru
          _
      $region60: #{tpu_custom_call.1} parent=5 // pred_fallthru
        _
    $region6: #{tpu_custom_call.1} parent=1 // loop_footer
      %s23 = sadd.s32 1, %s19
    $region7: #{tpu_custom_call.1} parent=1 // loop_footer_branch
      %18 = sbr.rel target = $region3
    $region8: #{tpu_custom_call.1} parent=1 // loop_exit
      _
    %516 = vsyncpa [#allocation6], 1
    %s517 = scalar_lea.sflag [#allocation6], 1
    %518 = vsyncpa %s517, 1
    %519 = vsyncpa [#allocation9], 1
    %s520 = scalar_lea.sflag [#allocation9], 1
    %521 = vsyncpa %s520, 1
    %522 = vsyncpa [#allocation7], 1
    %s523 = scalar_lea.sflag [#allocation7], 1
    %524 = vsyncpa %s523, 1

</llo_original>
